<compile_context>
chip_gen: v7x
topology: tpu7x:2x2x1
jax: 0.10.0
libtpu: 0.0.40
codegen_flags: <defaults>
</compile_context>

<pallas_src>
import functools
import math

import numpy as np
import jax
import jax.numpy as jnp
from jax.experimental import pallas as pl
from jax.experimental.pallas import tpu as pltpu

MIN_LOG_STD = math.log(1e-6)


def _round_up(x, m):
    return ((x + m - 1) // m) * m


def _policy_kernel(x_ref, w1_ref, b1_ref, w2_ref, b2_ref, wm_ref, bm_ref,
                   mean_ref, *, action_scale, action_bias):
    # x / weights are bf16; accumulate in f32 on the MXU.
    x = x_ref[...]

    # linear1 + relu (f32 elementwise)
    h = jnp.dot(x, w1_ref[...], preferred_element_type=jnp.float32) + b1_ref[...]
    h = jnp.maximum(h, 0.0)

    # linear2 + relu (downcast to bf16 only for the dot)
    h = jnp.dot(h.astype(jnp.bfloat16), w2_ref[...],
                preferred_element_type=jnp.float32) + b2_ref[...]
    h = jnp.maximum(h, 0.0)

    # mean head: tanh(...) * action_scale + action_bias (constants fold away)
    m = jnp.tanh(jnp.dot(h.astype(jnp.bfloat16), wm_ref[...],
                         preferred_element_type=jnp.float32) + bm_ref[...])
    mean_ref[...] = (m * action_scale + action_bias).astype(mean_ref.dtype)


def stochastic_policy_forward(state, params, action_scale=1.0, action_bias=0.0,
                              tile_b=512):
    """Returns (mean, std) of the Normal distribution produced by the module."""
    B, num_inputs = state.shape
    hidden = params["w1"].shape[1]
    A = params["wm"].shape[1]

    # Batch tile: multiple of 8 sublanes, no bigger than the (rounded-up) batch.
    tile_b = max(8, min(int(tile_b), _round_up(B, 8)))
    padded_b = _round_up(B, tile_b)

    x = state.astype(jnp.bfloat16)
    if padded_b != B:
        x = jnp.pad(x, ((0, padded_b - B), (0, 0)))

    w1 = params["w1"].astype(jnp.bfloat16)
    w2 = params["w2"].astype(jnp.bfloat16)
    wm = params["wm"].astype(jnp.bfloat16)
    b1 = params["b1"].astype(jnp.float32)
    b2 = params["b2"].astype(jnp.float32)
    bm = params["bm"].astype(jnp.float32)

    kernel = functools.partial(_policy_kernel,
                               action_scale=float(action_scale),
                               action_bias=float(action_bias))

    mean = pl.pallas_call(
        kernel,
        out_shape=jax.ShapeDtypeStruct((padded_b, A), jnp.float32),
        grid_spec=pltpu.PrefetchScalarGridSpec(
            num_scalar_prefetch=0,
            grid=(padded_b // tile_b,),
            in_specs=[
                pl.BlockSpec((tile_b, num_inputs), lambda i: (i, 0)),   # state tile
                pl.BlockSpec((num_inputs, hidden), lambda i: (0, 0)),   # w1 (resident)
                pl.BlockSpec((1, hidden), lambda i: (0, 0)),            # b1
                pl.BlockSpec((hidden, hidden), lambda i: (0, 0)),       # w2
                pl.BlockSpec((1, hidden), lambda i: (0, 0)),            # b2
                pl.BlockSpec((hidden, A), lambda i: (0, 0)),            # wm
                pl.BlockSpec((1, A), lambda i: (0, 0)),                 # bm
            ],
            out_specs=pl.BlockSpec((tile_b, A), lambda i: (i, 0)),
        ),
        compiler_params=pltpu.CompilerParams(
            dimension_semantics=("parallel",),        # v7x: shard batch across TCs
            vmem_limit_bytes=48 * 1024 * 1024,        # safe on v5e/v6e/v7x
        ),
    )(x, w1, b1, w2, b2, wm, bm)

    mean = mean[:B]

    # std = exp(clamp(log_std, min)) is input-independent -> compute in wrapper.
    log_std = jnp.maximum(params["log_std"].astype(jnp.float32), MIN_LOG_STD)
    std = jnp.broadcast_to(jnp.exp(log_std), (B, A))
    return mean, std


def init_params(key, num_inputs, num_actions, hidden_dim):
    """Matches the PyTorch module init: xavier_uniform(gain=1) weights,
    zero biases, log_std = log(0.1)."""
    def xavier(k, fan_in, fan_out):
        limit = math.sqrt(6.0 / (fan_in + fan_out))
        # stored as [in, out] (transposed relative to torch's [out, in])
        return jax.random.uniform(k, (fan_in, fan_out), jnp.float32, -limit, limit)

    k1, k2, k3 = jax.random.split(key, 3)
    return {
        "w1": xavier(k1, num_inputs, hidden_dim),
        "b1": jnp.zeros((1, hidden_dim), jnp.float32),
        "w2": xavier(k2, hidden_dim, hidden_dim),
        "b2": jnp.zeros((1, hidden_dim), jnp.float32),
        "wm": xavier(k3, hidden_dim, num_actions),
        "bm": jnp.zeros((1, num_actions), jnp.float32),
        "log_std": jnp.full((1, num_actions), math.log(0.1), jnp.float32),
    }


def _reference_forward(state, params, action_scale=1.0, action_bias=0.0):
    """Pure-JAX reference with the same bf16-operand / f32-accumulate pattern."""
    x = state.astype(jnp.bfloat16)
    w1 = params["w1"].astype(jnp.bfloat16)
    w2 = params["w2"].astype(jnp.bfloat16)
    wm = params["wm"].astype(jnp.bfloat16)

    h = jnp.dot(x, w1, preferred_element_type=jnp.float32) + params["b1"]
    h = jnp.maximum(h, 0.0)
    h = jnp.dot(h.astype(jnp.bfloat16), w2,
                preferred_element_type=jnp.float32) + params["b2"]
    h = jnp.maximum(h, 0.0)
    m = jnp.tanh(jnp.dot(h.astype(jnp.bfloat16), wm,
                         preferred_element_type=jnp.float32) + params["bm"])
    mean = m * action_scale + action_bias

    log_std = jnp.maximum(params["log_std"], MIN_LOG_STD)
    std = jnp.broadcast_to(jnp.exp(log_std), mean.shape)
    return mean, std


if __name__ == "__main__":
    key = jax.random.PRNGKey(0)
    kp, kx = jax.random.split(key)

    batch = 16
    num_inputs = 16
    num_actions = 8
    hidden_dim = 32

    params = init_params(kp, num_inputs, num_actions, hidden_dim)
    state = jax.random.normal(kx, (batch, num_inputs), jnp.float32)

    # tile_b=8 so the small demo batch exercises a 2-step grid.
    mean, std = stochastic_policy_forward(state, params, tile_b=8)
    jax.block_until_ready((mean, std))

    ref_mean, ref_std = _reference_forward(state, params)
    np.testing.assert_allclose(np.asarray(mean), np.asarray(ref_mean),
                               rtol=1e-3, atol=1e-3)
    np.testing.assert_allclose(np.asarray(std), np.asarray(ref_std),
                               rtol=1e-6, atol=1e-6)

    print("KERNEL_OK")
</pallas_src>

<mosaic_0001>
module attributes {stable_mosaic.version = 11 : i64} {
  func.func @_policy_kernel(%arg0: i32, %arg1: memref<8x16xbf16, #tpu.memory_space<vmem>>, %arg2: memref<16x32xbf16, #tpu.memory_space<vmem>>, %arg3: memref<1x32xf32, #tpu.memory_space<vmem>>, %arg4: memref<32x32xbf16, #tpu.memory_space<vmem>>, %arg5: memref<1x32xf32, #tpu.memory_space<vmem>>, %arg6: memref<32x8xbf16, #tpu.memory_space<vmem>>, %arg7: memref<1x8xf32, #tpu.memory_space<vmem>>, %arg8: memref<8x8xf32, #tpu.memory_space<vmem>>) attributes {dimension_semantics = [#tpu.dimension_semantics<parallel>], iteration_bounds = array<i64: 2>, scalar_prefetch = 0 : i64, scratch_operands = 0 : i64, tpu.core_type = #tpu.core_type<tc>, window_params = [{transform_indices = @transform_0, window_bounds = array<i64: 8, 16>}, {pipeline_mode = #tpu.pipeline_mode<synchronous>, transform_indices = @transform_1, window_bounds = array<i64: 16, 32>}, {pipeline_mode = #tpu.pipeline_mode<synchronous>, transform_indices = @transform_2, window_bounds = array<i64: 1, 32>}, {pipeline_mode = #tpu.pipeline_mode<synchronous>, transform_indices = @transform_3, window_bounds = array<i64: 32, 32>}, {pipeline_mode = #tpu.pipeline_mode<synchronous>, transform_indices = @transform_4, window_bounds = array<i64: 1, 32>}, {pipeline_mode = #tpu.pipeline_mode<synchronous>, transform_indices = @transform_5, window_bounds = array<i64: 32, 8>}, {pipeline_mode = #tpu.pipeline_mode<synchronous>, transform_indices = @transform_6, window_bounds = array<i64: 1, 8>}, {transform_indices = @transform_7, window_bounds = array<i64: 8, 8>}]} {
    %c0 = arith.constant 0 : index
    %c0_0 = arith.constant 0 : index
    %0 = vector.load %arg1[%c0, %c0_0] : memref<8x16xbf16, #tpu.memory_space<vmem>>, vector<8x16xbf16>
    %c0_1 = arith.constant 0 : index
    %c0_2 = arith.constant 0 : index
    %1 = vector.load %arg2[%c0_1, %c0_2] : memref<16x32xbf16, #tpu.memory_space<vmem>>, vector<16x32xbf16>
    %cst = arith.constant dense<0.000000e+00> : vector<8x32xf32>
    %2 = tpu.matmul %0, %1, %cst {dimension_numbers = #tpu.dot_dimension_numbers<[1], [0], [0], [1], [0, 0, 1, 1], [], []>} : vector<8x16xbf16>, vector<16x32xbf16>, vector<8x32xf32> -> vector<8x32xf32>
    %c0_3 = arith.constant 0 : index
    %c0_4 = arith.constant 0 : index
    %3 = vector.load %arg3[%c0_3, %c0_4] : memref<1x32xf32, #tpu.memory_space<vmem>>, vector<1x32xf32>
    %4 = vector.broadcast %3 : vector<1x32xf32> to vector<8x32xf32>
    %5 = arith.addf %2, %4 : vector<8x32xf32>
    %cst_5 = arith.constant 0.000000e+00 : f32
    %6 = vector.broadcast %cst_5 : f32 to vector<8x32xf32>
    %7 = arith.maximumf %5, %6 : vector<8x32xf32>
    %8 = arith.truncf %7 : vector<8x32xf32> to vector<8x32xbf16>
    %c0_6 = arith.constant 0 : index
    %c0_7 = arith.constant 0 : index
    %9 = vector.load %arg4[%c0_6, %c0_7] : memref<32x32xbf16, #tpu.memory_space<vmem>>, vector<32x32xbf16>
    %cst_8 = arith.constant dense<0.000000e+00> : vector<8x32xf32>
    %10 = tpu.matmul %8, %9, %cst_8 {dimension_numbers = #tpu.dot_dimension_numbers<[1], [0], [0], [1], [0, 0, 1, 1], [], []>} : vector<8x32xbf16>, vector<32x32xbf16>, vector<8x32xf32> -> vector<8x32xf32>
    %c0_9 = arith.constant 0 : index
    %c0_10 = arith.constant 0 : index
    %11 = vector.load %arg5[%c0_9, %c0_10] : memref<1x32xf32, #tpu.memory_space<vmem>>, vector<1x32xf32>
    %12 = vector.broadcast %11 : vector<1x32xf32> to vector<8x32xf32>
    %13 = arith.addf %10, %12 : vector<8x32xf32>
    %cst_11 = arith.constant 0.000000e+00 : f32
    %14 = vector.broadcast %cst_11 : f32 to vector<8x32xf32>
    %15 = arith.maximumf %13, %14 : vector<8x32xf32>
    %16 = arith.truncf %15 : vector<8x32xf32> to vector<8x32xbf16>
    %c0_12 = arith.constant 0 : index
    %c0_13 = arith.constant 0 : index
    %17 = vector.load %arg6[%c0_12, %c0_13] : memref<32x8xbf16, #tpu.memory_space<vmem>>, vector<32x8xbf16>
    %cst_14 = arith.constant dense<0.000000e+00> : vector<8x8xf32>
    %18 = tpu.matmul %16, %17, %cst_14 {dimension_numbers = #tpu.dot_dimension_numbers<[1], [0], [0], [1], [0, 0, 1, 1], [], []>} : vector<8x32xbf16>, vector<32x8xbf16>, vector<8x8xf32> -> vector<8x8xf32>
    %c0_15 = arith.constant 0 : index
    %c0_16 = arith.constant 0 : index
    %19 = vector.load %arg7[%c0_15, %c0_16] : memref<1x8xf32, #tpu.memory_space<vmem>>, vector<1x8xf32>
    %20 = vector.broadcast %19 : vector<1x8xf32> to vector<8x8xf32>
    %21 = arith.addf %18, %20 : vector<8x8xf32>
    %22 = math.tanh %21 : vector<8x8xf32>
    %cst_17 = arith.constant 1.000000e+00 : f32
    %23 = vector.broadcast %cst_17 : f32 to vector<8x8xf32>
    %24 = arith.mulf %22, %23 : vector<8x8xf32>
    %cst_18 = arith.constant 0.000000e+00 : f32
    %25 = vector.broadcast %cst_18 : f32 to vector<8x8xf32>
    %26 = arith.addf %24, %25 : vector<8x8xf32>
    %c0_19 = arith.constant 0 : index
    %c0_20 = arith.constant 0 : index
    %27 = vector.load %arg8[%c0_19, %c0_20] : memref<8x8xf32, #tpu.memory_space<vmem>>, vector<8x8xf32>
    tpu.vector_store %arg8[%c0_19, %c0_20], %26 {strides = array<i32>} : memref<8x8xf32, #tpu.memory_space<vmem>>, vector<8x8xf32>,
    return
  }
  func.func @transform_0(%arg0: i32) -> (i32, i32) {
    %c0_i32 = arith.constant 0 : i32
    %c0_i32_0 = arith.constant 0 : i32
    return %arg0, %c0_i32 : i32, i32
  }
  func.func @transform_1(%arg0: i32) -> (i32, i32) {
    %c0_i32 = arith.constant 0 : i32
    %c0_i32_0 = arith.constant 0 : i32
    %c0_i32_1 = arith.constant 0 : i32
    return %c0_i32, %c0_i32_0 : i32, i32
  }
  func.func @transform_2(%arg0: i32) -> (i32, i32) {
    %c0_i32 = arith.constant 0 : i32
    %c0_i32_0 = arith.constant 0 : i32
    %c0_i32_1 = arith.constant 0 : i32
    return %c0_i32, %c0_i32_0 : i32, i32
  }
  func.func @transform_3(%arg0: i32) -> (i32, i32) {
    %c0_i32 = arith.constant 0 : i32
    %c0_i32_0 = arith.constant 0 : i32
    %c0_i32_1 = arith.constant 0 : i32
    return %c0_i32, %c0_i32_0 : i32, i32
  }
  func.func @transform_4(%arg0: i32) -> (i32, i32) {
    %c0_i32 = arith.constant 0 : i32
    %c0_i32_0 = arith.constant 0 : i32
    %c0_i32_1 = arith.constant 0 : i32
    return %c0_i32, %c0_i32_0 : i32, i32
  }
  func.func @transform_5(%arg0: i32) -> (i32, i32) {
    %c0_i32 = arith.constant 0 : i32
    %c0_i32_0 = arith.constant 0 : i32
    %c0_i32_1 = arith.constant 0 : i32
    return %c0_i32, %c0_i32_0 : i32, i32
  }
  func.func @transform_6(%arg0: i32) -> (i32, i32) {
    %c0_i32 = arith.constant 0 : i32
    %c0_i32_0 = arith.constant 0 : i32
    %c0_i32_1 = arith.constant 0 : i32
    return %c0_i32, %c0_i32_0 : i32, i32
  }
  func.func @transform_7(%arg0: i32) -> (i32, i32) {
    %c0_i32 = arith.constant 0 : i32
    %c0_i32_0 = arith.constant 0 : i32
    return %arg0, %c0_i32 : i32, i32
  }
}

</mosaic_0001>

<llo_original>
// kernel: tpu_custom_call.1
$region0: #{tpu_custom_call.1}
  #allocation0 [shape = 'u32[]', space=smem, size = 0x4, offset = 0x4, fixed_abs, tag = 'smem constant byte address 0x4 - core index']
  #allocation1 [shape = 'u32[144,128]{1,0:T(1,128)}', space=vmem, size = 0x12000, scoped, tag = 'internal scratch']
  %s0 = inlined_call_operand.vmem [shape: bf16[16,16], index: 0, kind: input, shape index: {}]
  %s1 = inlined_call_operand.hbm [shape: bf16[16,32], index: 1, kind: input, shape index: {}]
  %s2 = inlined_call_operand.vmem [shape: f32[1,32], index: 2, kind: input, shape index: {}]
  %s3 = inlined_call_operand.vmem [shape: bf16[32,32], index: 3, kind: input, shape index: {}]
  %s4 = inlined_call_operand.vmem [shape: f32[1,32], index: 4, kind: input, shape index: {}]
  %s5 = inlined_call_operand.vmem [shape: bf16[32,8], index: 5, kind: input, shape index: {}]
  %s6 = inlined_call_operand.vmem [shape: f32[1,8], index: 6, kind: input, shape index: {}]
  %s7 = inlined_call_operand.vmem [shape: f32[16,8], index: 7, kind: output, shape index: {}]
  %s8 = sld [smem:[#allocation0]]
  $region65: #{tpu_custom_call.1} parent=0
    _
  %s10 = ssub.s32 1, %s8
  %s11 = scalar_select 0, %s10, %s8
  $region1: #{tpu_custom_call.1} parent=0
    #allocation2 [shape = 'u8[4096]{0}', space=vmem, size = 0x1000, scoped, tag = 'input window, operand 1, single buffered']
    #allocation3 [shape = 's32[2]{0}', space=sflag, size = 0x8, scoped, tag = 'scoped memory for tpu_custom_call.1']
    %12 = vsyncpa [#allocation3], 0
    loop: start=0, step=1, limit=4
    $region2: #{tpu_custom_call.1} parent=1 // loop_pre_header
      _
    $region3: #{tpu_custom_call.1} parent=1 // loop_header
      %s14 = sphi 0, %s18
      %p15 = scmp.ge.s32.totalorder %s14, 4
      %s24 = sphi 0, %s26
      %s27 = sphi 0, %s24
      %s28 = sphi 0, %s27
      %s44 = sphi 0, %s28
      %s48 = sphi 0, %s48
      %s50 = sphi 0, %s48
      %s51 = sphi 0, %s50
      %s65 = sphi 0, %s51
      %s69 = sphi 0, %s69
      %s71 = sphi 0, %s69
      %s72 = sphi 0, %s71
      %s86 = sphi 0, %s72
      %s90 = sphi 0, %s90
      %s92 = sphi 0, %s90
      %s93 = sphi 0, %s92
      %s107 = sphi 0, %s93
      %s111 = sphi 0, %s111
      %s113 = sphi 0, %s111
      %s114 = sphi 0, %s113
      %s128 = sphi 0, %s114
      %s132 = sphi 0, %s132
      %s134 = sphi 0, %s132
      %s135 = sphi 0, %s134
      %s149 = sphi 0, %s135
      %s153 = sphi 0, %s153
      %s155 = sphi 0, %s153
      %s156 = sphi 0, %s155
      %s170 = sphi 0, %s156
      %s176 = sphi 0, %s178
      %s179 = sphi 0, %s176
      %s180 = sphi 0, %s179
      %s196 = sphi 0, %s180
    $region4: #{tpu_custom_call.1} parent=1 // loop_header_branch
      %17 = sbr.rel (%p15) target = $region8
    $region5: #{tpu_custom_call.1} parent=1 // loop_body
      %s19 = ssub.s32 %s14, 1
      %s20 = ssub.s32 %s14, 2
      %s21 = sadd.s32 %s14, 1
      %s22 = ssub.s32 %s14, %s21
      %p23 = scmp.eq.s32.totalorder %s22, 0
      %s25 = sadd.s32 %s24, 1
      %s26 = scalar_select %p23, %s24, %s25
      %p29 = pneg %p23
      %p30 = scmp.eq.s32.totalorder %s14, 1
      %p31 = por %p29, %p30
      %p32 = scmp.ne.s32.totalorder %s24, %s27
      %p33 = scmp.eq.s32.totalorder %s14, 0
      %p34 = por %p32, %p33
      %p35 = scmp.ne.s32.totalorder %s24, %s27
      %p36 = scmp.eq.s32.totalorder %s19, 1
      %p37 = por %p35, %p36
      %p38 = scmp.ne.s32.totalorder %s27, %s28
      %p39 = scmp.eq.s32.totalorder %s19, 0
      %p40 = por %p38, %p39
      %p41 = scmp.ne.s32.totalorder %s27, %s28
      %p42 = scmp.eq.s32.totalorder %s20, 1
      %p43 = por %p41, %p42
      %p45 = scmp.ne.s32.totalorder %s28, %s44
      %p46 = scmp.eq.s32.totalorder %s20, 0
      %p47 = por %p45, %p46
      %s49 = sadd.s32 %s48, 1
      %p52 = scmp.eq.s32.totalorder %s14, 1
      %p53 = scmp.ne.s32.totalorder %s48, %s50
      %p54 = scmp.eq.s32.totalorder %s14, 0
      %p55 = por %p53, %p54
      %p56 = scmp.ne.s32.totalorder %s48, %s50
      %p57 = scmp.eq.s32.totalorder %s19, 1
      %p58 = por %p56, %p57
      %p59 = scmp.ne.s32.totalorder %s50, %s51
      %p60 = scmp.eq.s32.totalorder %s19, 0
      %p61 = por %p59, %p60
      %p62 = scmp.ne.s32.totalorder %s50, %s51
      %p63 = scmp.eq.s32.totalorder %s20, 1
      %p64 = por %p62, %p63
      %p66 = scmp.ne.s32.totalorder %s51, %s65
      %p67 = scmp.eq.s32.totalorder %s20, 0
      %p68 = por %p66, %p67
      %s70 = sadd.s32 %s69, 1
      %p73 = scmp.eq.s32.totalorder %s14, 1
      %p74 = scmp.ne.s32.totalorder %s69, %s71
      %p75 = scmp.eq.s32.totalorder %s14, 0
      %p76 = por %p74, %p75
      %p77 = scmp.ne.s32.totalorder %s69, %s71
      %p78 = scmp.eq.s32.totalorder %s19, 1
      %p79 = por %p77, %p78
      %p80 = scmp.ne.s32.totalorder %s71, %s72
      %p81 = scmp.eq.s32.totalorder %s19, 0
      %p82 = por %p80, %p81
      %p83 = scmp.ne.s32.totalorder %s71, %s72
      %p84 = scmp.eq.s32.totalorder %s20, 1
      %p85 = por %p83, %p84
      %p87 = scmp.ne.s32.totalorder %s72, %s86
      %p88 = scmp.eq.s32.totalorder %s20, 0
      %p89 = por %p87, %p88
      %s91 = sadd.s32 %s90, 1
      %p94 = scmp.eq.s32.totalorder %s14, 1
      %p95 = scmp.ne.s32.totalorder %s90, %s92
      %p96 = scmp.eq.s32.totalorder %s14, 0
      %p97 = por %p95, %p96
      %p98 = scmp.ne.s32.totalorder %s90, %s92
      %p99 = scmp.eq.s32.totalorder %s19, 1
      %p100 = por %p98, %p99
      %p101 = scmp.ne.s32.totalorder %s92, %s93
      %p102 = scmp.eq.s32.totalorder %s19, 0
      %p103 = por %p101, %p102
      %p104 = scmp.ne.s32.totalorder %s92, %s93
      %p105 = scmp.eq.s32.totalorder %s20, 1
      %p106 = por %p104, %p105
      %p108 = scmp.ne.s32.totalorder %s93, %s107
      %p109 = scmp.eq.s32.totalorder %s20, 0
      %p110 = por %p108, %p109
      %s112 = sadd.s32 %s111, 1
      %p115 = scmp.eq.s32.totalorder %s14, 1
      %p116 = scmp.ne.s32.totalorder %s111, %s113
      %p117 = scmp.eq.s32.totalorder %s14, 0
      %p118 = por %p116, %p117
      %p119 = scmp.ne.s32.totalorder %s111, %s113
      %p120 = scmp.eq.s32.totalorder %s19, 1
      %p121 = por %p119, %p120
      %p122 = scmp.ne.s32.totalorder %s113, %s114
      %p123 = scmp.eq.s32.totalorder %s19, 0
      %p124 = por %p122, %p123
      %p125 = scmp.ne.s32.totalorder %s113, %s114
      %p126 = scmp.eq.s32.totalorder %s20, 1
      %p127 = por %p125, %p126
      %p129 = scmp.ne.s32.totalorder %s114, %s128
      %p130 = scmp.eq.s32.totalorder %s20, 0
      %p131 = por %p129, %p130
      %s133 = sadd.s32 %s132, 1
      %p136 = scmp.eq.s32.totalorder %s14, 1
      %p137 = scmp.ne.s32.totalorder %s132, %s134
      %p138 = scmp.eq.s32.totalorder %s14, 0
      %p139 = por %p137, %p138
      %p140 = scmp.ne.s32.totalorder %s132, %s134
      %p141 = scmp.eq.s32.totalorder %s19, 1
      %p142 = por %p140, %p141
      %p143 = scmp.ne.s32.totalorder %s134, %s135
      %p144 = scmp.eq.s32.totalorder %s19, 0
      %p145 = por %p143, %p144
      %p146 = scmp.ne.s32.totalorder %s134, %s135
      %p147 = scmp.eq.s32.totalorder %s20, 1
      %p148 = por %p146, %p147
      %p150 = scmp.ne.s32.totalorder %s135, %s149
      %p151 = scmp.eq.s32.totalorder %s20, 0
      %p152 = por %p150, %p151
      %s154 = sadd.s32 %s153, 1
      %p157 = scmp.eq.s32.totalorder %s14, 1
      %p158 = scmp.ne.s32.totalorder %s153, %s155
      %p159 = scmp.eq.s32.totalorder %s14, 0
      %p160 = por %p158, %p159
      %p161 = scmp.ne.s32.totalorder %s153, %s155
      %p162 = scmp.eq.s32.totalorder %s19, 1
      %p163 = por %p161, %p162
      %p164 = scmp.ne.s32.totalorder %s155, %s156
      %p165 = scmp.eq.s32.totalorder %s19, 0
      %p166 = por %p164, %p165
      %p167 = scmp.ne.s32.totalorder %s155, %s156
      %p168 = scmp.eq.s32.totalorder %s20, 1
      %p169 = por %p167, %p168
      %p171 = scmp.ne.s32.totalorder %s156, %s170
      %p172 = scmp.eq.s32.totalorder %s20, 0
      %p173 = por %p171, %p172
      %s174 = ssub.s32 %s14, %s21
      %p175 = scmp.eq.s32.totalorder %s174, 0
      %s177 = sadd.s32 %s176, 1
      %s178 = scalar_select %p175, %s176, %s177
      %p181 = pneg %p175
      %p182 = scmp.eq.s32.totalorder %s14, 1
      %p183 = por %p181, %p182
      %p184 = scmp.ne.s32.totalorder %s176, %s179
      %p185 = scmp.eq.s32.totalorder %s14, 0
      %p186 = por %p184, %p185
      %p187 = scmp.ne.s32.totalorder %s176, %s179
      %p188 = scmp.eq.s32.totalorder %s19, 1
      %p189 = por %p187, %p188
      %p190 = scmp.ne.s32.totalorder %s179, %s180
      %p191 = scmp.eq.s32.totalorder %s19, 0
      %p192 = por %p190, %p191
      %p193 = scmp.ne.s32.totalorder %s179, %s180
      %p194 = scmp.eq.s32.totalorder %s20, 1
      %p195 = por %p193, %p194
      %p197 = scmp.ne.s32.totalorder %s180, %s196
      %p198 = scmp.eq.s32.totalorder %s20, 0
      %p199 = por %p197, %p198
      %p200 = scmp.le.s32.totalorder 1, %s14
      %p201 = scmp.lt.s32.totalorder %s14, 3
      %p202 = pnand %p200, %p201
      %p203 = pneg %p202
      // Predicated region
      $region9: #{tpu_custom_call.1} parent=5 // pred_check
        _
      $region10: #{tpu_custom_call.1} parent=5 // pred_check_branch
        %205 = sbr.rel (%p202) target = $region12
      $region11: #{tpu_custom_call.1} parent=5 // pred_region
        %s206 = ssub.s32 %s14, 1
        // Predicated region
        $region13: #{tpu_custom_call.1} parent=11 // pred_check
          %p207 = pneg %p61
        $region14: #{tpu_custom_call.1} parent=11 // pred_check_branch
          %209 = sbr.rel (%p207) target = $region16
        $region15: #{tpu_custom_call.1} parent=11 // pred_region
          %s211 = ssub.s32 128, 128
          %212 = vsyncadd [#allocation3], %s211
          %s213 = sshll.u32 [#allocation2], 4
          %s214 = int_to_ptr.vmem [resolvable:$true] %s213
          %219 = dma.hbm_to_vmem [thread:$0]  %s1, 128, %s214, [#allocation3], 64, 64, 4
        $region16: #{tpu_custom_call.1} parent=11 // pred_fallthru
          _
        // Predicated region
        $region17: #{tpu_custom_call.1} parent=11 // pred_check
          %p220 = pneg %p82
        $region18: #{tpu_custom_call.1} parent=11 // pred_check_branch
          %222 = sbr.rel (%p220) target = $region20
        $region19: #{tpu_custom_call.1} parent=11 // pred_region
          _
        $region20: #{tpu_custom_call.1} parent=11 // pred_fallthru
          _
        // Predicated region
        $region21: #{tpu_custom_call.1} parent=11 // pred_check
          %p223 = pneg %p103
        $region22: #{tpu_custom_call.1} parent=11 // pred_check_branch
          %225 = sbr.rel (%p223) target = $region24
        $region23: #{tpu_custom_call.1} parent=11 // pred_region
          _
        $region24: #{tpu_custom_call.1} parent=11 // pred_fallthru
          _
        // Predicated region
        $region25: #{tpu_custom_call.1} parent=11 // pred_check
          %p226 = pneg %p124
        $region26: #{tpu_custom_call.1} parent=11 // pred_check_branch
          %228 = sbr.rel (%p226) target = $region28
        $region27: #{tpu_custom_call.1} parent=11 // pred_region
          _
        $region28: #{tpu_custom_call.1} parent=11 // pred_fallthru
          _
        // Predicated region
        $region29: #{tpu_custom_call.1} parent=11 // pred_check
          %p229 = pneg %p145
        $region30: #{tpu_custom_call.1} parent=11 // pred_check_branch
          %231 = sbr.rel (%p229) target = $region32
        $region31: #{tpu_custom_call.1} parent=11 // pred_region
          _
        $region32: #{tpu_custom_call.1} parent=11 // pred_fallthru
          _
        // Predicated region
        $region33: #{tpu_custom_call.1} parent=11 // pred_check
          %p232 = pneg %p166
        $region34: #{tpu_custom_call.1} parent=11 // pred_check_branch
          %234 = sbr.rel (%p232) target = $region36
        $region35: #{tpu_custom_call.1} parent=11 // pred_region
          _
        $region36: #{tpu_custom_call.1} parent=11 // pred_fallthru
          _
      $region12: #{tpu_custom_call.1} parent=5 // pred_fallthru
        _
      %p235 = scmp.lt.s32.totalorder %s14, 2
      // Predicated region
      $region37: #{tpu_custom_call.1} parent=5 // pred_check
        %p236 = pneg %p235
      $region38: #{tpu_custom_call.1} parent=5 // pred_check_branch
        %238 = sbr.rel (%p236) target = $region40
      $region39: #{tpu_custom_call.1} parent=5 // pred_region
        // Predicated region
        $region41: #{tpu_custom_call.1} parent=39 // pred_check
          %p239 = pneg %p34
        $region42: #{tpu_custom_call.1} parent=39 // pred_check_branch
          %241 = sbr.rel (%p239) target = $region44
        $region43: #{tpu_custom_call.1} parent=39 // pred_region
          %p242 = scmp.lt.s32.totalorder %s14, 1
          %s243 = scalar_select %p242, %s14, 1
          %s244 = smul.addr %s243, 4
          %s245 = scalar_lea.vmem %s0, %s244
        $region44: #{tpu_custom_call.1} parent=39 // pred_fallthru
          _
      $region40: #{tpu_custom_call.1} parent=5 // pred_fallthru
        _
      %p246 = scmp.le.s32.totalorder 1, %s14
      %p247 = scmp.lt.s32.totalorder %s14, 3
      %p248 = pnand %p246, %p247
      %p249 = pneg %p248
      // Predicated region
      $region45: #{tpu_custom_call.1} parent=5 // pred_check
        _
      $region46: #{tpu_custom_call.1} parent=5 // pred_check_branch
        %251 = sbr.rel (%p248) target = $region48
      $region47: #{tpu_custom_call.1} parent=5 // pred_region
        %s252 = ssub.s32 %s14, 1
        // Predicated region
        $region49: #{tpu_custom_call.1} parent=47 // pred_check
          %p253 = pneg %p61
        $region50: #{tpu_custom_call.1} parent=47 // pred_check_branch
          %255 = sbr.rel (%p253) target = $region52
        $region51: #{tpu_custom_call.1} parent=47 // pred_region
          %256 = dma.done [#allocation3], 128
        $region52: #{tpu_custom_call.1} parent=47 // pred_fallthru
          _
        %p257 = scmp.lt.s32.totalorder %s19, 1
        %s258 = scalar_select %p257, %s19, 1
        %s259 = smul.addr %s258, 4
        %s260 = scalar_lea.vmem %s0, %s259
        %p261 = pneg %p40
        %p262 = pneg %p37
        %p263 = pneg %p61
        %p264 = pneg %p58
        %p265 = pneg %p82
        %p266 = pneg %p79
        %p267 = pneg %p103
        %p268 = pneg %p100
        %p269 = pneg %p124
        %p270 = pneg %p121
        %p271 = pneg %p145
        %p272 = pneg %p142
        %p273 = pneg %p166
        %p274 = pneg %p163
        %p275 = pneg %p192
        %p276 = pneg %p189
        %p277 = scmp.lt.s32.totalorder %s19, 1
        %s278 = scalar_select %p277, %s19, 1
        %s279 = smul.addr %s278, 8
        %s280 = scalar_lea.vmem %s7, %s279
        %p281 = scmp.lt.s32.totalorder %s19, 1
        %s282 = scalar_select %p281, %s19, 1
        %s283 = smul.addr %s282, 4
        %s284 = scalar_lea.vmem %s0, %s283
        %p285 = scmp.lt.s32.totalorder %s19, 1
        %s286 = scalar_select %p285, %s19, 1
        %s287 = smul.addr %s286, 8
        %s288 = scalar_lea.vmem %s7, %s287
        %v290 = vld [vmem:[%s284] sm:$0xf]
        %v291 = vld [vmem:[#allocation2] sm:$0xf]
        %v292 = vld [vmem:[#allocation2 + $0x4] sm:$0xf]
        %v293 = vld [vmem:[%s2] sm:$0x1]
        %v295 = vlaneseq
        %v296 = vshrl.u32 %v295, 7
        %v297 = vsub.s32 0, %v296
        %v298 = vrot.slane %v293, %v297
        %v302 = vunpack.c.l.b16 %v291
        %v303 = vunpack.c.l.b16 %v292
        %v304 = vpack.c.b16 %v303, %v302
        %vm306 = vcmask 130048
        %v308 = vsel %vm306, %v290, 0
        %310 = vmatprep.subr.bf16.mxu0 0
        %311 = vmatpush1.bf16.msra.mxu0 %v304
        %312 = vmatprep.subr.bf16.mxu0 0
        %313 = vmatpush1.bf16.msra.mxu0 0
        %314 = vmatprep.subr.bf16.mxu0 0
        %315 = vmatpush1.bf16.msra.mxu0 0
        %316 = vmatprep.subr.bf16.mxu0 0
        %317 = vmatpush1.bf16.msra.mxu0 0
        %318 = vmatprep.subr.bf16.mxu0 0
        %319 = vmatpush1.bf16.msra.mxu0 0
        %320 = vmatprep.subr.bf16.mxu0 0
        %321 = vmatpush1.bf16.msra.mxu0 0
        %322 = vmatprep.subr.bf16.mxu0 0
        %323 = vmatpush1.bf16.msra.mxu0 0
        %324 = vmatprep.subr.bf16.mxu0 0
        %325 = vmatpush1.bf16.msra.mxu0 0
        %326 = vmatprep.subr.bf16.mxu0 0
        %327 = vmatpush1.bf16.msra.mxu0 0
        %328 = vmatprep.subr.bf16.mxu0 0
        %329 = vmatpush1.bf16.msra.mxu0 0
        %330 = vmatprep.subr.bf16.mxu0 0
        %331 = vmatpush1.bf16.msra.mxu0 0
        %332 = vmatprep.subr.bf16.mxu0 0
        %333 = vmatpush1.bf16.msra.mxu0 0
        %334 = vmatprep.subr.bf16.mxu0 0
        %335 = vmatpush1.bf16.msra.mxu0 0
        %336 = vmatprep.subr.bf16.mxu0 0
        %337 = vmatpush1.bf16.msra.mxu0 0
        %338 = vmatprep.subr.bf16.mxu0 0
        %339 = vmatpush1.bf16.msra.mxu0 0
        %340 = vmatprep.subr.bf16.mxu0 0
        %341 = vmatpush1.bf16.msra.mxu0 0
        %342 = vmatprep.mubr.bf16.mxu0 0
        %343 = vmatmul.mubr.bf16.gmra.mrb[0].mxu0 %v308
        %v344 = vpop.f32.mrb[0].mxu0
        %v345 = vadd.f32 %v298, %v344
        %v346 = vpop.f32.mrb[0].mxu0
        %v347 = vpop.f32.mrb[0].mxu0
        %v348 = vpop.f32.mrb[0].mxu0
        %349 = vdwg.mxu0
        %v350 = vmax.f32 %v345, 0.0
        %v351 = vpack.c.bf16 %v350, %v350
        %v352 = vld [vmem:[%s3] sm:$0xf]
        %v353 = vld [vmem:[%s3 + $0x4] sm:$0xf]
        %v354 = vld [vmem:[%s3 + $0x8] sm:$0xf]
        %v355 = vld [vmem:[%s3 + $0xc] sm:$0xf]
        %v356 = vld [vmem:[%s4] sm:$0x1]
        %v358 = vlaneseq
        %v359 = vshrl.u32 %v358, 7
        %v360 = vsub.s32 0, %v359
        %v361 = vrot.slane %v356, %v360
        %v367 = vunpack.c.l.b16 %v352
        %v368 = vunpack.c.l.b16 %v353
        %v369 = vunpack.c.l.b16 %v354
        %v370 = vunpack.c.l.b16 %v355
        %v371 = vpack.c.b16 %v368, %v367
        %v372 = vpack.c.b16 %v370, %v369
        %vm375 = vcmask 261120
        %v377 = vsel %vm375, %v351, 0
        %379 = vmatprep.subr.bf16.mxu0 0
        %380 = vmatpush1.bf16.msra.mxu0 %v371
        %381 = vmatprep.subr.bf16.mxu0 0
        %382 = vmatpush1.bf16.msra.mxu0 %v372
        %383 = vmatprep.subr.bf16.mxu0 0
        %384 = vmatpush1.bf16.msra.mxu0 0
        %385 = vmatprep.subr.bf16.mxu0 0
        %386 = vmatpush1.bf16.msra.mxu0 0
        %387 = vmatprep.subr.bf16.mxu0 0
        %388 = vmatpush1.bf16.msra.mxu0 0
        %389 = vmatprep.subr.bf16.mxu0 0
        %390 = vmatpush1.bf16.msra.mxu0 0
        %391 = vmatprep.subr.bf16.mxu0 0
        %392 = vmatpush1.bf16.msra.mxu0 0
        %393 = vmatprep.subr.bf16.mxu0 0
        %394 = vmatpush1.bf16.msra.mxu0 0
        %395 = vmatprep.subr.bf16.mxu0 0
        %396 = vmatpush1.bf16.msra.mxu0 0
        %397 = vmatprep.subr.bf16.mxu0 0
        %398 = vmatpush1.bf16.msra.mxu0 0
        %399 = vmatprep.subr.bf16.mxu0 0
        %400 = vmatpush1.bf16.msra.mxu0 0
        %401 = vmatprep.subr.bf16.mxu0 0
        %402 = vmatpush1.bf16.msra.mxu0 0
        %403 = vmatprep.subr.bf16.mxu0 0
        %404 = vmatpush1.bf16.msra.mxu0 0
        %405 = vmatprep.subr.bf16.mxu0 0
        %406 = vmatpush1.bf16.msra.mxu0 0
        %407 = vmatprep.subr.bf16.mxu0 0
        %408 = vmatpush1.bf16.msra.mxu0 0
        %409 = vmatprep.subr.bf16.mxu0 0
        %410 = vmatpush1.bf16.msra.mxu0 0
        %411 = vmatprep.mubr.bf16.mxu0 0
        %412 = vmatmul.mubr.bf16.gmra.mrb[0].mxu0 %v377
        %v413 = vpop.f32.mrb[0].mxu0
        %v414 = vadd.f32 %v361, %v413
        %v415 = vpop.f32.mrb[0].mxu0
        %v416 = vpop.f32.mrb[0].mxu0
        %v417 = vpop.f32.mrb[0].mxu0
        %418 = vdwg.mxu0
        %v419 = vmax.f32 %v414, 0.0
        %v420 = vpack.c.bf16 %v419, %v419
        %v421 = vld [vmem:[%s5] sm:$0xf]
        %v422 = vld [vmem:[%s5 + $0x4] sm:$0xf]
        %v423 = vld [vmem:[%s5 + $0x8] sm:$0xf]
        %v424 = vld [vmem:[%s5 + $0xc] sm:$0xf]
        %v425 = vld [vmem:[%s6] sm:$0x1]
        %v427 = vlaneseq
        %v428 = vshrl.u32 %v427, 7
        %v429 = vsub.s32 0, %v428
        %v430 = vrot.slane %v425, %v429
        %v436 = vunpack.c.l.b16 %v421
        %v437 = vunpack.c.l.b16 %v422
        %v438 = vunpack.c.l.b16 %v423
        %v439 = vunpack.c.l.b16 %v424
        %v440 = vpack.c.b16 %v437, %v436
        %v441 = vpack.c.b16 %v439, %v438
        %v445 = vsel %vm375, %v420, 0
        %447 = vmatprep.subr.bf16.mxu0 0
        %448 = vmatpush1.bf16.msra.mxu0 %v440
        %449 = vmatprep.subr.bf16.mxu0 0
        %450 = vmatpush1.bf16.msra.mxu0 %v441
        %451 = vmatprep.subr.bf16.mxu0 0
        %452 = vmatpush1.bf16.msra.mxu0 0
        %453 = vmatprep.subr.bf16.mxu0 0
        %454 = vmatpush1.bf16.msra.mxu0 0
        %455 = vmatprep.subr.bf16.mxu0 0
        %456 = vmatpush1.bf16.msra.mxu0 0
        %457 = vmatprep.subr.bf16.mxu0 0
        %458 = vmatpush1.bf16.msra.mxu0 0
        %459 = vmatprep.subr.bf16.mxu0 0
        %460 = vmatpush1.bf16.msra.mxu0 0
        %461 = vmatprep.subr.bf16.mxu0 0
        %462 = vmatpush1.bf16.msra.mxu0 0
        %463 = vmatprep.subr.bf16.mxu0 0
        %464 = vmatpush1.bf16.msra.mxu0 0
        %465 = vmatprep.subr.bf16.mxu0 0
        %466 = vmatpush1.bf16.msra.mxu0 0
        %467 = vmatprep.subr.bf16.mxu0 0
        %468 = vmatpush1.bf16.msra.mxu0 0
        %469 = vmatprep.subr.bf16.mxu0 0
        %470 = vmatpush1.bf16.msra.mxu0 0
        %471 = vmatprep.subr.bf16.mxu0 0
        %472 = vmatpush1.bf16.msra.mxu0 0
        %473 = vmatprep.subr.bf16.mxu0 0
        %474 = vmatpush1.bf16.msra.mxu0 0
        %475 = vmatprep.subr.bf16.mxu0 0
        %476 = vmatpush1.bf16.msra.mxu0 0
        %477 = vmatprep.subr.bf16.mxu0 0
        %478 = vmatpush1.bf16.msra.mxu0 0
        %479 = vmatprep.mubr.bf16.mxu0 0
        %480 = vmatmul.mubr.bf16.gmra.mrb[0].mxu0 %v445
        %v481 = vpop.f32.mrb[0].mxu0
        %v482 = vadd.f32 %v430, %v481
        %v483 = vpop.f32.mrb[0].mxu0
        %v484 = vpop.f32.mrb[0].mxu0
        %v485 = vpop.f32.mrb[0].mxu0
        %486 = vdwg.mxu0
        %v487 = vtanh.pop %v482
        %v488 = vadd.f32 %v487, 0.0
        %vm489 = vcmask 64512
        %490 = vst.msk [vmem:[%s288] sm:$0xff] %vm489, %v488
        %p491 = scmp.lt.s32.totalorder %s19, 1
        %s492 = scalar_select %p491, %s19, 1
        %s493 = smul.addr %s492, 8
        %s494 = scalar_lea.vmem %s7, %s493
        // Predicated region
        $region53: #{tpu_custom_call.1} parent=47 // pred_check
          %p495 = pneg %p189
        $region54: #{tpu_custom_call.1} parent=47 // pred_check_branch
          %497 = sbr.rel (%p495) target = $region56
        $region55: #{tpu_custom_call.1} parent=47 // pred_region
          _
        $region56: #{tpu_custom_call.1} parent=47 // pred_fallthru
          _
      $region48: #{tpu_custom_call.1} parent=5 // pred_fallthru
        _
      %p498 = scmp.le.s32.totalorder 2, %s14
      // Predicated region
      $region57: #{tpu_custom_call.1} parent=5 // pred_check
        %p499 = pneg %p498
      $region58: #{tpu_custom_call.1} parent=5 // pred_check_branch
        %501 = sbr.rel (%p499) target = $region60
      $region59: #{tpu_custom_call.1} parent=5 // pred_region
        %s502 = ssub.s32 %s14, 2
        // Predicated region
        $region61: #{tpu_custom_call.1} parent=59 // pred_check
          %p503 = pneg %p195
        $region62: #{tpu_custom_call.1} parent=59 // pred_check_branch
          %505 = sbr.rel (%p503) target = $region64
        $region63: #{tpu_custom_call.1} parent=59 // pred_region
          %p506 = scmp.lt.s32.totalorder %s20, 1
          %s507 = scalar_select %p506, %s20, 1
          %s508 = smul.addr %s507, 8
          %s509 = scalar_lea.vmem %s7, %s508
        $region64: #{tpu_custom_call.1} parent=59 // pred_fallthru
          _
      $region60: #{tpu_custom_call.1} parent=5 // pred_fallthru
        _
    $region6: #{tpu_custom_call.1} parent=1 // loop_footer
      %s18 = sadd.s32 1, %s14
    $region7: #{tpu_custom_call.1} parent=1 // loop_footer_branch
      %13 = sbr.rel target = $region3
    $region8: #{tpu_custom_call.1} parent=1 // loop_exit
      _
    %510 = vsyncpa [#allocation3], 1
    %s511 = scalar_lea.sflag [#allocation3], 1
    %512 = vsyncpa %s511, 1

</llo_original>
